<compile_context>
chip_gen: v7x
topology: tpu7x:2x2x1
jax: 0.10.0
libtpu: 0.0.40
codegen_flags: <defaults>
</compile_context>

<pallas_src>
import jax
import jax.numpy as jnp
from jax import lax
from jax.experimental import pallas as pl
from jax.experimental.pallas import tpu as pltpu

# --- LIF encoder constants (norse LIFParameters defaults, dt=1e-3) ----------
DT = 1e-3
TAU_MEM_INV = 1.0 / 1e-2   # 100.0
V_LEAK = 0.0
V_TH = 1.0
V_RESET = 0.0

LANE = 128
_VMEM_PIPELINE_BUDGET = 16 * 1024 * 1024   # fits v7x's 32 MiB scoped default w/ headroom
_VMEM_LIMIT_CAP = 32 * 1024 * 1024
_UNROLL_FULLY_MAX_SEQ = 32


def _round_up(x: int, mult: int) -> int:
    return ((x + mult - 1) // mult) * mult


def _lif_encode_kernel(x_ref, out_ref):
    """x_ref: (tm, 128) constant current tile.  out_ref: (seq, tm, 128) spikes."""
    seq = out_ref.shape[0]
    out_dtype = out_ref.dtype

    # Hoisted per-tile constants (strength-reduced LIF update).
    current = x_ref[...].astype(jnp.float32)
    alpha = jnp.float32(DT * TAU_MEM_INV)
    decay = jnp.float32(1.0 - DT * TAU_MEM_INV)
    drive = alpha * (current + jnp.float32(V_LEAK))
    v_th = jnp.float32(V_TH)
    v_reset = jnp.float32(V_RESET)

    def step(t, v):
        v = decay * v + drive                     # membrane update
        spike = v > v_th                          # strict > (norse heaviside)
        out_ref[t] = spike.astype(out_dtype)      # store spike plane for step t
        return jnp.where(spike, v_reset, v)       # reset (V_RESET == 0)

    v0 = jnp.zeros_like(current)
    if seq <= _UNROLL_FULLY_MAX_SEQ:
        # Fully unrolled: static stores, LLO can overlap VALU of step t with
        # the vst of step t-1.
        v = v0
        for t in range(seq):
            v = step(t, v)
    else:
        lax.fori_loop(0, seq, step, v0, unroll=8)


def _choose_tile(seq_length: int, m_aligned: int, align: int,
                 in_bytes: int, out_bytes: int) -> int:
    """Largest aligned sublane tile whose double-buffered in+out fits the budget."""
    per_sublane = 2 * LANE * (in_bytes + seq_length * out_bytes)
    tm = (_VMEM_PIPELINE_BUDGET // per_sublane) // align * align
    tm = max(align, tm)
    tm = min(tm, m_aligned)
    # Prefer >= 2 grid steps when there is enough work so the "parallel" grid
    # axis can be split across the two TensorCores (v7x megacore).
    if tm >= m_aligned and m_aligned >= 2 * align:
        tm = _round_up(pl.cdiv(m_aligned, 2), align)
    return tm


def direct_encoder(x: jax.Array, seq_length: int) -> jax.Array:
    """Pallas implementation of DirectEncoder.forward.

    x: any-shaped float array (e.g. NCHW (B, C, H, W)).
    returns: (seq_length, *x.shape) spike train (0.0 / 1.0), dtype of x.
    """
    orig_shape = x.shape
    out_dtype = x.dtype
    n = x.size

    in_bytes = jnp.dtype(x.dtype).itemsize
    out_bytes = in_bytes
    # Min sublane tile per dtype packing: f32 -> 8, bf16 -> 16, int8/fp8 -> 32.
    align = max(8, 32 // in_bytes)

    m_aligned = _round_up(pl.cdiv(n, LANE), align)
    tm = _choose_tile(seq_length, m_aligned, align, in_bytes, out_bytes)
    grid_m = pl.cdiv(m_aligned, tm)
    m_pad = grid_m * tm
    n_pad = m_pad * LANE

    x_flat = x.reshape(-1)
    if n_pad != n:
        # Padded lanes carry zero current and therefore never spike.
        x_flat = jnp.pad(x_flat, (0, n_pad - n))
    x2d = x_flat.reshape(m_pad, LANE)

    # Explicit VMEM limit: the big-tile schedule exceeds v5e's 16 MiB default.
    pipeline_bytes = 2 * tm * LANE * in_bytes + 2 * seq_length * tm * LANE * out_bytes
    vmem_limit = int(min(max(pipeline_bytes * 5 // 4 + (2 << 20), 16 << 20),
                         _VMEM_LIMIT_CAP))

    out2d = pl.pallas_call(
        _lif_encode_kernel,
        out_shape=jax.ShapeDtypeStruct((seq_length, m_pad, LANE), out_dtype),
        grid_spec=pltpu.PrefetchScalarGridSpec(
            num_scalar_prefetch=0,
            grid=(grid_m,),
            in_specs=[pl.BlockSpec((tm, LANE), lambda i: (i, 0))],
            out_specs=pl.BlockSpec((seq_length, tm, LANE), lambda i: (0, i, 0)),
        ),
        compiler_params=pltpu.CompilerParams(
            dimension_semantics=("parallel",),
            vmem_limit_bytes=vmem_limit,
        ),
    )(x2d)

    if n_pad != n:
        out = out2d.reshape(seq_length, n_pad)[:, :n]
    else:
        out = out2d.reshape(seq_length, n)
    return out.reshape((seq_length,) + orig_shape)


def _direct_encoder_ref(x: jax.Array, seq_length: int) -> jax.Array:
    """Pure-JAX reference (same strength-reduced recurrence, same rounding)."""
    xs = x.astype(jnp.float32)
    alpha = jnp.float32(DT * TAU_MEM_INV)
    decay = jnp.float32(1.0 - DT * TAU_MEM_INV)
    drive = alpha * (xs + jnp.float32(V_LEAK))
    v = jnp.zeros_like(xs)
    spikes = []
    for _ in range(seq_length):
        v = decay * v + drive
        z = v > jnp.float32(V_TH)
        spikes.append(z.astype(x.dtype))
        v = jnp.where(z, jnp.float32(V_RESET), v)
    return jnp.stack(spikes)


if __name__ == "__main__":
    SEQ_LENGTH = 8
    key = jax.random.PRNGKey(0)
    # NCHW input, scaled so some neurons actually cross threshold within SEQ steps.
    x = jax.random.uniform(key, (2, 4, 16, 16), dtype=jnp.float32) * 4.0

    y = direct_encoder(x, SEQ_LENGTH)
    y = jax.block_until_ready(y)

    y_ref = _direct_encoder_ref(x, SEQ_LENGTH)
    assert y.shape == (SEQ_LENGTH, 2, 4, 16, 16), y.shape
    assert y.dtype == x.dtype, y.dtype
    assert jnp.array_equal(y, y_ref), "mismatch vs. reference"

    print("KERNEL_OK")
</pallas_src>

<mosaic_0001>
module attributes {stable_mosaic.version = 11 : i64} {
  func.func @_lif_encode_kernel(%arg0: i32, %arg1: memref<8x128xf32, #tpu.memory_space<vmem>>, %arg2: memref<8x8x128xf32, #tpu.memory_space<vmem>>) attributes {dimension_semantics = [#tpu.dimension_semantics<parallel>], iteration_bounds = array<i64: 2>, scalar_prefetch = 0 : i64, scratch_operands = 0 : i64, tpu.core_type = #tpu.core_type<tc>, window_params = [{transform_indices = @transform_0, window_bounds = array<i64: 8, 128>}, {transform_indices = @transform_1, window_bounds = array<i64: 8, 8, 128>}]} {
    %c0 = arith.constant 0 : index
    %c0_0 = arith.constant 0 : index
    %0 = vector.load %arg1[%c0, %c0_0] : memref<8x128xf32, #tpu.memory_space<vmem>>, vector<8x128xf32>
    %cst = arith.constant 0.000000e+00 : f32
    %1 = vector.broadcast %cst : f32 to vector<8x128xf32>
    %2 = arith.addf %0, %1 : vector<8x128xf32>
    %cst_1 = arith.constant 1.000000e-01 : f32
    %3 = vector.broadcast %cst_1 : f32 to vector<8x128xf32>
    %4 = arith.mulf %3, %2 : vector<8x128xf32>
    %cst_2 = arith.constant 0.000000e+00 : f32
    %5 = vector.broadcast %cst_2 : f32 to vector<8x128xf32>
    %cst_3 = arith.constant 0.899999976 : f32
    %6 = vector.broadcast %cst_3 : f32 to vector<8x128xf32>
    %7 = arith.mulf %6, %5 : vector<8x128xf32>
    %8 = arith.addf %7, %4 : vector<8x128xf32>
    %cst_4 = arith.constant 1.000000e+00 : f32
    %9 = vector.broadcast %cst_4 : f32 to vector<8x128xf32>
    %10 = arith.cmpf ogt, %8, %9 : vector<8x128xf32>
    %11 = arith.extui %10 : vector<8x128xi1> to vector<8x128xi32>
    %12 = arith.sitofp %11 : vector<8x128xi32> to vector<8x128xf32>
    %c0_5 = arith.constant 0 : index
    %c0_6 = arith.constant 0 : index
    %c0_7 = arith.constant 0 : index
    %13 = vector.load %arg2[%c0_5, %c0_6, %c0_7] : memref<8x8x128xf32, #tpu.memory_space<vmem>>, vector<1x8x128xf32>
    %14 = vector.shape_cast %13 : vector<1x8x128xf32> to vector<8x128xf32>
    %15 = vector.shape_cast %12 : vector<8x128xf32> to vector<1x8x128xf32>
    tpu.vector_store %arg2[%c0_5, %c0_6, %c0_7], %15 {strides = array<i32>} : memref<8x8x128xf32, #tpu.memory_space<vmem>>, vector<1x8x128xf32>,
    %cst_8 = arith.constant 0.000000e+00 : f32
    %16 = vector.broadcast %cst_8 : f32 to vector<8x128xf32>
    %17 = arith.select %10, %16, %8 : vector<8x128xi1>, vector<8x128xf32>
    %cst_9 = arith.constant 0.899999976 : f32
    %18 = vector.broadcast %cst_9 : f32 to vector<8x128xf32>
    %19 = arith.mulf %18, %17 : vector<8x128xf32>
    %20 = arith.addf %19, %4 : vector<8x128xf32>
    %cst_10 = arith.constant 1.000000e+00 : f32
    %21 = vector.broadcast %cst_10 : f32 to vector<8x128xf32>
    %22 = arith.cmpf ogt, %20, %21 : vector<8x128xf32>
    %23 = arith.extui %22 : vector<8x128xi1> to vector<8x128xi32>
    %24 = arith.sitofp %23 : vector<8x128xi32> to vector<8x128xf32>
    %c1 = arith.constant 1 : index
    %c0_11 = arith.constant 0 : index
    %c0_12 = arith.constant 0 : index
    %25 = vector.load %arg2[%c1, %c0_11, %c0_12] : memref<8x8x128xf32, #tpu.memory_space<vmem>>, vector<1x8x128xf32>
    %26 = vector.shape_cast %25 : vector<1x8x128xf32> to vector<8x128xf32>
    %27 = vector.shape_cast %24 : vector<8x128xf32> to vector<1x8x128xf32>
    tpu.vector_store %arg2[%c1, %c0_11, %c0_12], %27 {strides = array<i32>} : memref<8x8x128xf32, #tpu.memory_space<vmem>>, vector<1x8x128xf32>,
    %cst_13 = arith.constant 0.000000e+00 : f32
    %28 = vector.broadcast %cst_13 : f32 to vector<8x128xf32>
    %29 = arith.select %22, %28, %20 : vector<8x128xi1>, vector<8x128xf32>
    %cst_14 = arith.constant 0.899999976 : f32
    %30 = vector.broadcast %cst_14 : f32 to vector<8x128xf32>
    %31 = arith.mulf %30, %29 : vector<8x128xf32>
    %32 = arith.addf %31, %4 : vector<8x128xf32>
    %cst_15 = arith.constant 1.000000e+00 : f32
    %33 = vector.broadcast %cst_15 : f32 to vector<8x128xf32>
    %34 = arith.cmpf ogt, %32, %33 : vector<8x128xf32>
    %35 = arith.extui %34 : vector<8x128xi1> to vector<8x128xi32>
    %36 = arith.sitofp %35 : vector<8x128xi32> to vector<8x128xf32>
    %c2 = arith.constant 2 : index
    %c0_16 = arith.constant 0 : index
    %c0_17 = arith.constant 0 : index
    %37 = vector.load %arg2[%c2, %c0_16, %c0_17] : memref<8x8x128xf32, #tpu.memory_space<vmem>>, vector<1x8x128xf32>
    %38 = vector.shape_cast %37 : vector<1x8x128xf32> to vector<8x128xf32>
    %39 = vector.shape_cast %36 : vector<8x128xf32> to vector<1x8x128xf32>
    tpu.vector_store %arg2[%c2, %c0_16, %c0_17], %39 {strides = array<i32>} : memref<8x8x128xf32, #tpu.memory_space<vmem>>, vector<1x8x128xf32>,
    %cst_18 = arith.constant 0.000000e+00 : f32
    %40 = vector.broadcast %cst_18 : f32 to vector<8x128xf32>
    %41 = arith.select %34, %40, %32 : vector<8x128xi1>, vector<8x128xf32>
    %cst_19 = arith.constant 0.899999976 : f32
    %42 = vector.broadcast %cst_19 : f32 to vector<8x128xf32>
    %43 = arith.mulf %42, %41 : vector<8x128xf32>
    %44 = arith.addf %43, %4 : vector<8x128xf32>
    %cst_20 = arith.constant 1.000000e+00 : f32
    %45 = vector.broadcast %cst_20 : f32 to vector<8x128xf32>
    %46 = arith.cmpf ogt, %44, %45 : vector<8x128xf32>
    %47 = arith.extui %46 : vector<8x128xi1> to vector<8x128xi32>
    %48 = arith.sitofp %47 : vector<8x128xi32> to vector<8x128xf32>
    %c3 = arith.constant 3 : index
    %c0_21 = arith.constant 0 : index
    %c0_22 = arith.constant 0 : index
    %49 = vector.load %arg2[%c3, %c0_21, %c0_22] : memref<8x8x128xf32, #tpu.memory_space<vmem>>, vector<1x8x128xf32>
    %50 = vector.shape_cast %49 : vector<1x8x128xf32> to vector<8x128xf32>
    %51 = vector.shape_cast %48 : vector<8x128xf32> to vector<1x8x128xf32>
    tpu.vector_store %arg2[%c3, %c0_21, %c0_22], %51 {strides = array<i32>} : memref<8x8x128xf32, #tpu.memory_space<vmem>>, vector<1x8x128xf32>,
    %cst_23 = arith.constant 0.000000e+00 : f32
    %52 = vector.broadcast %cst_23 : f32 to vector<8x128xf32>
    %53 = arith.select %46, %52, %44 : vector<8x128xi1>, vector<8x128xf32>
    %cst_24 = arith.constant 0.899999976 : f32
    %54 = vector.broadcast %cst_24 : f32 to vector<8x128xf32>
    %55 = arith.mulf %54, %53 : vector<8x128xf32>
    %56 = arith.addf %55, %4 : vector<8x128xf32>
    %cst_25 = arith.constant 1.000000e+00 : f32
    %57 = vector.broadcast %cst_25 : f32 to vector<8x128xf32>
    %58 = arith.cmpf ogt, %56, %57 : vector<8x128xf32>
    %59 = arith.extui %58 : vector<8x128xi1> to vector<8x128xi32>
    %60 = arith.sitofp %59 : vector<8x128xi32> to vector<8x128xf32>
    %c4 = arith.constant 4 : index
    %c0_26 = arith.constant 0 : index
    %c0_27 = arith.constant 0 : index
    %61 = vector.load %arg2[%c4, %c0_26, %c0_27] : memref<8x8x128xf32, #tpu.memory_space<vmem>>, vector<1x8x128xf32>
    %62 = vector.shape_cast %61 : vector<1x8x128xf32> to vector<8x128xf32>
    %63 = vector.shape_cast %60 : vector<8x128xf32> to vector<1x8x128xf32>
    tpu.vector_store %arg2[%c4, %c0_26, %c0_27], %63 {strides = array<i32>} : memref<8x8x128xf32, #tpu.memory_space<vmem>>, vector<1x8x128xf32>,
    %cst_28 = arith.constant 0.000000e+00 : f32
    %64 = vector.broadcast %cst_28 : f32 to vector<8x128xf32>
    %65 = arith.select %58, %64, %56 : vector<8x128xi1>, vector<8x128xf32>
    %cst_29 = arith.constant 0.899999976 : f32
    %66 = vector.broadcast %cst_29 : f32 to vector<8x128xf32>
    %67 = arith.mulf %66, %65 : vector<8x128xf32>
    %68 = arith.addf %67, %4 : vector<8x128xf32>
    %cst_30 = arith.constant 1.000000e+00 : f32
    %69 = vector.broadcast %cst_30 : f32 to vector<8x128xf32>
    %70 = arith.cmpf ogt, %68, %69 : vector<8x128xf32>
    %71 = arith.extui %70 : vector<8x128xi1> to vector<8x128xi32>
    %72 = arith.sitofp %71 : vector<8x128xi32> to vector<8x128xf32>
    %c5 = arith.constant 5 : index
    %c0_31 = arith.constant 0 : index
    %c0_32 = arith.constant 0 : index
    %73 = vector.load %arg2[%c5, %c0_31, %c0_32] : memref<8x8x128xf32, #tpu.memory_space<vmem>>, vector<1x8x128xf32>
    %74 = vector.shape_cast %73 : vector<1x8x128xf32> to vector<8x128xf32>
    %75 = vector.shape_cast %72 : vector<8x128xf32> to vector<1x8x128xf32>
    tpu.vector_store %arg2[%c5, %c0_31, %c0_32], %75 {strides = array<i32>} : memref<8x8x128xf32, #tpu.memory_space<vmem>>, vector<1x8x128xf32>,
    %cst_33 = arith.constant 0.000000e+00 : f32
    %76 = vector.broadcast %cst_33 : f32 to vector<8x128xf32>
    %77 = arith.select %70, %76, %68 : vector<8x128xi1>, vector<8x128xf32>
    %cst_34 = arith.constant 0.899999976 : f32
    %78 = vector.broadcast %cst_34 : f32 to vector<8x128xf32>
    %79 = arith.mulf %78, %77 : vector<8x128xf32>
    %80 = arith.addf %79, %4 : vector<8x128xf32>
    %cst_35 = arith.constant 1.000000e+00 : f32
    %81 = vector.broadcast %cst_35 : f32 to vector<8x128xf32>
    %82 = arith.cmpf ogt, %80, %81 : vector<8x128xf32>
    %83 = arith.extui %82 : vector<8x128xi1> to vector<8x128xi32>
    %84 = arith.sitofp %83 : vector<8x128xi32> to vector<8x128xf32>
    %c6 = arith.constant 6 : index
    %c0_36 = arith.constant 0 : index
    %c0_37 = arith.constant 0 : index
    %85 = vector.load %arg2[%c6, %c0_36, %c0_37] : memref<8x8x128xf32, #tpu.memory_space<vmem>>, vector<1x8x128xf32>
    %86 = vector.shape_cast %85 : vector<1x8x128xf32> to vector<8x128xf32>
    %87 = vector.shape_cast %84 : vector<8x128xf32> to vector<1x8x128xf32>
    tpu.vector_store %arg2[%c6, %c0_36, %c0_37], %87 {strides = array<i32>} : memref<8x8x128xf32, #tpu.memory_space<vmem>>, vector<1x8x128xf32>,
    %cst_38 = arith.constant 0.000000e+00 : f32
    %88 = vector.broadcast %cst_38 : f32 to vector<8x128xf32>
    %89 = arith.select %82, %88, %80 : vector<8x128xi1>, vector<8x128xf32>
    %cst_39 = arith.constant 0.899999976 : f32
    %90 = vector.broadcast %cst_39 : f32 to vector<8x128xf32>
    %91 = arith.mulf %90, %89 : vector<8x128xf32>
    %92 = arith.addf %91, %4 : vector<8x128xf32>
    %cst_40 = arith.constant 1.000000e+00 : f32
    %93 = vector.broadcast %cst_40 : f32 to vector<8x128xf32>
    %94 = arith.cmpf ogt, %92, %93 : vector<8x128xf32>
    %95 = arith.extui %94 : vector<8x128xi1> to vector<8x128xi32>
    %96 = arith.sitofp %95 : vector<8x128xi32> to vector<8x128xf32>
    %c7 = arith.constant 7 : index
    %c0_41 = arith.constant 0 : index
    %c0_42 = arith.constant 0 : index
    %97 = vector.load %arg2[%c7, %c0_41, %c0_42] : memref<8x8x128xf32, #tpu.memory_space<vmem>>, vector<1x8x128xf32>
    %98 = vector.shape_cast %97 : vector<1x8x128xf32> to vector<8x128xf32>
    %99 = vector.shape_cast %96 : vector<8x128xf32> to vector<1x8x128xf32>
    tpu.vector_store %arg2[%c7, %c0_41, %c0_42], %99 {strides = array<i32>} : memref<8x8x128xf32, #tpu.memory_space<vmem>>, vector<1x8x128xf32>,
    return
  }
  func.func @transform_0(%arg0: i32) -> (i32, i32) {
    %c0_i32 = arith.constant 0 : i32
    %c0_i32_0 = arith.constant 0 : i32
    return %arg0, %c0_i32 : i32, i32
  }
  func.func @transform_1(%arg0: i32) -> (i32, i32, i32) {
    %c0_i32 = arith.constant 0 : i32
    %c0_i32_0 = arith.constant 0 : i32
    %c0_i32_1 = arith.constant 0 : i32
    return %c0_i32, %arg0, %c0_i32_0 : i32, i32, i32
  }
}

</mosaic_0001>

<llo_original>
// kernel: tpu_custom_call.1
$region0: #{tpu_custom_call.1}
  #allocation0 [shape = 'u32[]', space=smem, size = 0x4, offset = 0x4, fixed_abs, tag = 'smem constant byte address 0x4 - core index']
  #allocation1 [shape = 'u32[144,128]{1,0:T(1,128)}', space=vmem, size = 0x12000, scoped, tag = 'internal scratch']
  %s0 = inlined_call_operand.hbm [shape: f32[16,128], index: 0, kind: input, shape index: {}]
  %s1 = inlined_call_operand.hbm [shape: f32[8,16,128], index: 1, kind: output, shape index: {}]
  %s2 = sld [smem:[#allocation0]]
  $region41: #{tpu_custom_call.1} parent=0
    _
  %s4 = ssub.s32 1, %s2
  %s5 = scalar_select 0, %s4, %s2
  $region1: #{tpu_custom_call.1} parent=0
    #allocation2 [shape = 'u8[8192]{0}', space=vmem, size = 0x2000, scoped, tag = 'input window, operand 0']
    #allocation3 [shape = 's32[2]{0}', space=sflag, size = 0x8, scoped, tag = 'scoped memory for tpu_custom_call.1']
    #allocation4 [shape = 's32[2]{0}', space=sflag, size = 0x8, scoped, tag = 'scoped memory for tpu_custom_call.1']
    #allocation5 [shape = 'u8[65536]{0}', space=vmem, size = 0x10000, scoped, tag = 'output window, operand 0']
    %6 = vsyncpa [#allocation3], 0
    %s7 = scalar_lea.sflag [#allocation3], 1
    %8 = vsyncpa %s7, 0
    %9 = vsyncpa [#allocation4], 0
    %s10 = scalar_lea.sflag [#allocation4], 1
    %11 = vsyncpa %s10, 0
    loop: start=0, step=1, limit=4
    $region2: #{tpu_custom_call.1} parent=1 // loop_pre_header
      _
    $region3: #{tpu_custom_call.1} parent=1 // loop_header
      %s13 = sphi 0, %s17
      %p14 = scmp.ge.s32.totalorder %s13, 4
      %s23 = sphi 0, %s25
      %s26 = sphi 0, %s23
      %s27 = sphi 0, %s26
      %s43 = sphi 0, %s27
      %s49 = sphi 0, %s51
      %s52 = sphi 0, %s49
      %s53 = sphi 0, %s52
      %s69 = sphi 0, %s53
    $region4: #{tpu_custom_call.1} parent=1 // loop_header_branch
      %16 = sbr.rel (%p14) target = $region8
    $region5: #{tpu_custom_call.1} parent=1 // loop_body
      %s18 = ssub.s32 %s13, 1
      %s19 = ssub.s32 %s13, 2
      %s20 = sadd.s32 %s13, 1
      %s21 = ssub.s32 %s13, %s20
      %p22 = scmp.eq.s32.totalorder %s21, 0
      %s24 = sadd.s32 %s23, 1
      %s25 = scalar_select %p22, %s23, %s24
      %p28 = pneg %p22
      %p29 = scmp.eq.s32.totalorder %s13, 1
      %p30 = por %p28, %p29
      %p31 = scmp.ne.s32.totalorder %s23, %s26
      %p32 = scmp.eq.s32.totalorder %s13, 0
      %p33 = por %p31, %p32
      %p34 = scmp.ne.s32.totalorder %s23, %s26
      %p35 = scmp.eq.s32.totalorder %s18, 1
      %p36 = por %p34, %p35
      %p37 = scmp.ne.s32.totalorder %s26, %s27
      %p38 = scmp.eq.s32.totalorder %s18, 0
      %p39 = por %p37, %p38
      %p40 = scmp.ne.s32.totalorder %s26, %s27
      %p41 = scmp.eq.s32.totalorder %s19, 1
      %p42 = por %p40, %p41
      %p44 = scmp.ne.s32.totalorder %s27, %s43
      %p45 = scmp.eq.s32.totalorder %s19, 0
      %p46 = por %p44, %p45
      %s47 = ssub.s32 %s13, %s20
      %p48 = scmp.eq.s32.totalorder %s47, 0
      %s50 = sadd.s32 %s49, 1
      %s51 = scalar_select %p48, %s49, %s50
      %p54 = pneg %p48
      %p55 = scmp.eq.s32.totalorder %s13, 1
      %p56 = por %p54, %p55
      %p57 = scmp.ne.s32.totalorder %s49, %s52
      %p58 = scmp.eq.s32.totalorder %s13, 0
      %p59 = por %p57, %p58
      %p60 = scmp.ne.s32.totalorder %s49, %s52
      %p61 = scmp.eq.s32.totalorder %s18, 1
      %p62 = por %p60, %p61
      %p63 = scmp.ne.s32.totalorder %s52, %s53
      %p64 = scmp.eq.s32.totalorder %s18, 0
      %p65 = por %p63, %p64
      %p66 = scmp.ne.s32.totalorder %s52, %s53
      %p67 = scmp.eq.s32.totalorder %s19, 1
      %p68 = por %p66, %p67
      %p70 = scmp.ne.s32.totalorder %s53, %s69
      %p71 = scmp.eq.s32.totalorder %s19, 0
      %p72 = por %p70, %p71
      %p73 = scmp.le.s32.totalorder 1, %s13
      %p74 = scmp.lt.s32.totalorder %s13, 3
      %p75 = pnand %p73, %p74
      %p76 = pneg %p75
      // Predicated region
      $region9: #{tpu_custom_call.1} parent=5 // pred_check
        _
      $region10: #{tpu_custom_call.1} parent=5 // pred_check_branch
        %78 = sbr.rel (%p75) target = $region12
      $region11: #{tpu_custom_call.1} parent=5 // pred_region
        %s79 = ssub.s32 %s13, 1
      $region12: #{tpu_custom_call.1} parent=5 // pred_fallthru
        _
      %p80 = scmp.lt.s32.totalorder %s13, 2
      // Predicated region
      $region13: #{tpu_custom_call.1} parent=5 // pred_check
        %p81 = pneg %p80
      $region14: #{tpu_custom_call.1} parent=5 // pred_check_branch
        %83 = sbr.rel (%p81) target = $region16
      $region15: #{tpu_custom_call.1} parent=5 // pred_region
        // Predicated region
        $region17: #{tpu_custom_call.1} parent=15 // pred_check
          %p84 = pneg %p33
        $region18: #{tpu_custom_call.1} parent=15 // pred_check_branch
          %86 = sbr.rel (%p84) target = $region20
        $region19: #{tpu_custom_call.1} parent=15 // pred_region
          %s87 = sand.u32 %s23, 1
          %s88 = scalar_lea.sflag [#allocation3], %s87
          %s89 = sand.u32 %s23, 1
          %s90 = smul.addr %s89, 8
          %s91 = scalar_lea.vmem [#allocation2], %s90
          %s93 = ssub.s32 128, 128
          %94 = vsyncadd %s88, %s93
          %s95 = smul.addr %s13, 128
          %s96 = scalar_lea.hbm %s0, %s95
          %s98 = sshll.u32 %s91, 4
          %s99 = int_to_ptr.vmem [resolvable:$true] %s98
          %101 = dma.hbm_to_vmem [thread:$0]  %s96, 128, %s99, %s88
        $region20: #{tpu_custom_call.1} parent=15 // pred_fallthru
          _
      $region16: #{tpu_custom_call.1} parent=5 // pred_fallthru
        _
      %p102 = scmp.le.s32.totalorder 1, %s13
      %p103 = scmp.lt.s32.totalorder %s13, 3
      %p104 = pnand %p102, %p103
      %p105 = pneg %p104
      // Predicated region
      $region21: #{tpu_custom_call.1} parent=5 // pred_check
        _
      $region22: #{tpu_custom_call.1} parent=5 // pred_check_branch
        %107 = sbr.rel (%p104) target = $region24
      $region23: #{tpu_custom_call.1} parent=5 // pred_region
        %s108 = ssub.s32 %s13, 1
        %s109 = sand.u32 %s26, 1
        %s110 = scalar_lea.sflag [#allocation3], %s109
        %s111 = sand.u32 %s26, 1
        %s112 = smul.addr %s111, 8
        %s113 = scalar_lea.vmem [#allocation2], %s112
        // Predicated region
        $region25: #{tpu_custom_call.1} parent=23 // pred_check
          %p114 = pneg %p39
        $region26: #{tpu_custom_call.1} parent=23 // pred_check_branch
          %116 = sbr.rel (%p114) target = $region28
        $region27: #{tpu_custom_call.1} parent=23 // pred_region
          %117 = dma.done %s110, 128
        $region28: #{tpu_custom_call.1} parent=23 // pred_fallthru
          _
        %s118 = sand.u32 %s26, 1
        %s119 = scalar_lea.sflag [#allocation3], %s118
        %s120 = sand.u32 %s26, 1
        %s121 = smul.addr %s120, 8
        %s122 = scalar_lea.vmem [#allocation2], %s121
        %p123 = pneg %p39
        %p124 = pneg %p36
        %p125 = pneg %p65
        %p126 = pneg %p62
        %s127 = sand.u32 %s52, 1
        %s128 = scalar_lea.sflag [#allocation4], %s127
        %s129 = sand.u32 %s52, 1
        %s130 = smul.addr %s129, 64
        %s131 = scalar_lea.vmem [#allocation5], %s130
        %v132 = vld [vmem:[%s113] sm:$0xff]
        %v133 = vadd.f32 %v132, 0.0
        %v134 = vmul.f32 %v133, 0.1
        %v135 = vadd.f32 %v134, 0.0
        %vm136 = vcmp.gt.f32.partialorder %v135, 1.0
        %v137 = vsel %vm136, 1, 0
        %v138 = vcvt.s32.f32 %v137
        %139 = vst [vmem:[%s131] sm:$0xff] %v138
        %v140 = vsel %vm136, 0.0, %v135
        %v141 = vmul.f32 %v140, 0.9
        %v142 = vadd.f32 %v141, %v134
        %vm143 = vcmp.gt.f32.partialorder %v142, 1.0
        %v144 = vsel %vm143, 1, 0
        %v145 = vcvt.s32.f32 %v144
        %s146 = scalar_lea.vmem %s131, 8 [#allocation5]
        %147 = vst [vmem:[%s146] sm:$0xff] %v145
        %v148 = vsel %vm143, 0.0, %v142
        %v149 = vmul.f32 %v148, 0.9
        %v150 = vadd.f32 %v149, %v134
        %vm151 = vcmp.gt.f32.partialorder %v150, 1.0
        %v152 = vsel %vm151, 1, 0
        %v153 = vcvt.s32.f32 %v152
        %s154 = scalar_lea.vmem %s131, 16 [#allocation5]
        %155 = vst [vmem:[%s154] sm:$0xff] %v153
        %v156 = vsel %vm151, 0.0, %v150
        %v157 = vmul.f32 %v156, 0.9
        %v158 = vadd.f32 %v157, %v134
        %vm159 = vcmp.gt.f32.partialorder %v158, 1.0
        %v160 = vsel %vm159, 1, 0
        %v161 = vcvt.s32.f32 %v160
        %s162 = scalar_lea.vmem %s131, 24 [#allocation5]
        %163 = vst [vmem:[%s162] sm:$0xff] %v161
        %v164 = vsel %vm159, 0.0, %v158
        %v165 = vmul.f32 %v164, 0.9
        %v166 = vadd.f32 %v165, %v134
        %vm167 = vcmp.gt.f32.partialorder %v166, 1.0
        %v168 = vsel %vm167, 1, 0
        %v169 = vcvt.s32.f32 %v168
        %s170 = scalar_lea.vmem %s131, 32 [#allocation5]
        %171 = vst [vmem:[%s170] sm:$0xff] %v169
        %v172 = vsel %vm167, 0.0, %v166
        %v173 = vmul.f32 %v172, 0.9
        %v174 = vadd.f32 %v173, %v134
        %vm175 = vcmp.gt.f32.partialorder %v174, 1.0
        %v176 = vsel %vm175, 1, 0
        %v177 = vcvt.s32.f32 %v176
        %s178 = scalar_lea.vmem %s131, 40 [#allocation5]
        %179 = vst [vmem:[%s178] sm:$0xff] %v177
        %v180 = vsel %vm175, 0.0, %v174
        %v181 = vmul.f32 %v180, 0.9
        %v182 = vadd.f32 %v181, %v134
        %vm183 = vcmp.gt.f32.partialorder %v182, 1.0
        %v184 = vsel %vm183, 1, 0
        %v185 = vcvt.s32.f32 %v184
        %s186 = scalar_lea.vmem %s131, 48 [#allocation5]
        %187 = vst [vmem:[%s186] sm:$0xff] %v185
        %v188 = vsel %vm183, 0.0, %v182
        %v189 = vmul.f32 %v188, 0.9
        %v190 = vadd.f32 %v189, %v134
        %vm191 = vcmp.gt.f32.partialorder %v190, 1.0
        %v192 = vsel %vm191, 1, 0
        %v193 = vcvt.s32.f32 %v192
        %s194 = scalar_lea.vmem %s131, 56 [#allocation5]
        %195 = vst [vmem:[%s194] sm:$0xff] %v193
        %s196 = sand.u32 %s52, 1
        %s197 = scalar_lea.sflag [#allocation4], %s196
        %s198 = sand.u32 %s52, 1
        %s199 = smul.addr %s198, 64
        %s200 = scalar_lea.vmem [#allocation5], %s199
        // Predicated region
        $region29: #{tpu_custom_call.1} parent=23 // pred_check
          %p201 = pneg %p62
        $region30: #{tpu_custom_call.1} parent=23 // pred_check_branch
          %203 = sbr.rel (%p201) target = $region32
        $region31: #{tpu_custom_call.1} parent=23 // pred_region
          %s205 = ssub.s32 1024, 1024
          %206 = vsyncadd %s197, %s205
          %s207 = smul.addr %s18, 128
          %s208 = scalar_lea.hbm %s1, %s207
          %s209 = sshll.u32 %s200, 4
          %s210 = int_to_ptr.vmem [resolvable:$true] %s209
          %215 = dma.vmem_to_hbm [thread:$0]  %s210, 1024, %s208, %s197, 128, 256, 8
        $region32: #{tpu_custom_call.1} parent=23 // pred_fallthru
          _
      $region24: #{tpu_custom_call.1} parent=5 // pred_fallthru
        _
      %p216 = scmp.le.s32.totalorder 2, %s13
      // Predicated region
      $region33: #{tpu_custom_call.1} parent=5 // pred_check
        %p217 = pneg %p216
      $region34: #{tpu_custom_call.1} parent=5 // pred_check_branch
        %219 = sbr.rel (%p217) target = $region36
      $region35: #{tpu_custom_call.1} parent=5 // pred_region
        %s220 = ssub.s32 %s13, 2
        // Predicated region
        $region37: #{tpu_custom_call.1} parent=35 // pred_check
          %p221 = pneg %p68
        $region38: #{tpu_custom_call.1} parent=35 // pred_check_branch
          %223 = sbr.rel (%p221) target = $region40
        $region39: #{tpu_custom_call.1} parent=35 // pred_region
          %s224 = sand.u32 %s53, 1
          %s225 = scalar_lea.sflag [#allocation4], %s224
          %s226 = sand.u32 %s53, 1
          %s227 = smul.addr %s226, 64
          %s228 = scalar_lea.vmem [#allocation5], %s227
          %229 = dma.done %s225, 1024
        $region40: #{tpu_custom_call.1} parent=35 // pred_fallthru
          _
      $region36: #{tpu_custom_call.1} parent=5 // pred_fallthru
        _
    $region6: #{tpu_custom_call.1} parent=1 // loop_footer
      %s17 = sadd.s32 1, %s13
    $region7: #{tpu_custom_call.1} parent=1 // loop_footer_branch
      %12 = sbr.rel target = $region3
    $region8: #{tpu_custom_call.1} parent=1 // loop_exit
      _
    %230 = vsyncpa [#allocation3], 1
    %s231 = scalar_lea.sflag [#allocation3], 1
    %232 = vsyncpa %s231, 1
    %233 = vsyncpa [#allocation4], 1
    %s234 = scalar_lea.sflag [#allocation4], 1
    %235 = vsyncpa %s234, 1

</llo_original>
